<compile_context>
chip_gen: v6e
topology: v6e:2x2x1
jax: 0.10.0
libtpu: 0.0.40
codegen_flags: <defaults>
</compile_context>

<pallas_src>
import functools

import jax
import jax.numpy as jnp
from jax.experimental import pallas as pl
from jax.experimental.pallas import tpu as pltpu


def _round_up(x, m):
    return ((x + m - 1) // m) * m


def mil_linear_kernel(h_ref, vt_ref, w_ref, wct_ref, bc_ref, out_ref,
                      m_ref, l_ref, acc_ref, *, n_valid, nt, apply_mask):
    """One grid step = one (bag, N-tile) pair.

    h_ref  : [NT, D]     tile-embedding slab for this bag (native dtype, batch squeezed)
    vt_ref : [D, A_pad]  attention projection (transposed, zero-padded, f32)
    w_ref  : [1, A_pad]  attention scoring vector (row, zero-padded, f32)
    wct_ref: [D, C_pad]  classifier weight (transposed, zero-padded, f32)
    bc_ref : [1, C_pad]  classifier bias (zero-padded, f32)
    out_ref: [1, C_pad]  logits for this bag (resident across the N axis)
    m/l/acc: running softmax max / denominator / weighted-sum scratch (f32)
    """
    nk = pl.program_id(1)

    @pl.when(nk == 0)
    def _init():
        m_ref[...] = jnp.full_like(m_ref, -jnp.inf)
        l_ref[...] = jnp.zeros_like(l_ref)
        acc_ref[...] = jnp.zeros_like(acc_ref)

    # h streams from HBM in its native (possibly bf16) dtype; promote once in VMEM.
    h = h_ref[...].astype(jnp.float32)                                   # [NT, D]

    # --- attention scores --------------------------------------------------
    hidden = jnp.tanh(
        jnp.dot(h, vt_ref[...], preferred_element_type=jnp.float32))     # [NT, A_pad]  (MXU)
    # width-1 matmul replaced by VPU multiply + lane reduce
    scores = jnp.sum(hidden * w_ref[...], axis=1, keepdims=True)         # [NT, 1]

    if apply_mask:
        # Last block is ragged: rows >= n_valid hold uninitialized OOB VMEM.
        # (For non-last blocks the predicate is all-true; cost is negligible
        #  vs. HBM streaming.)
        row = nt * nk + jax.lax.broadcasted_iota(jnp.int32, scores.shape, 0)
        valid = row < n_valid                                             # [NT, 1]
        scores = jnp.where(valid, scores, -jnp.inf)

    # --- online softmax accumulation ---------------------------------------
    m_old = m_ref[...]
    m_new = jnp.maximum(m_old, jnp.max(scores, axis=0, keepdims=True))   # [1, 1]
    alpha = jnp.exp(m_old - m_new)                                        # [1, 1]
    p = jnp.exp(scores - m_new)                                           # [NT, 1]
    l_ref[...] = alpha * l_ref[...] + jnp.sum(p, axis=0, keepdims=True)

    # M=1 matmul + transpose replaced by VPU multiply + sublane reduce
    ph = p * h                                                            # [NT, D]
    if apply_mask:
        # p is exactly 0 on masked rows, but 0 * NaN/Inf garbage = NaN -> zero it.
        ph = jnp.where(valid, ph, 0.0)
    acc_ref[...] = alpha * acc_ref[...] + jnp.sum(ph, axis=0, keepdims=True)  # [1, D]
    m_ref[...] = m_new

    # --- finalize: normalize + linear classifier (last N-tile only) --------
    @pl.when(nk == pl.num_programs(1) - 1)
    def _finalize():
        inv_l = pl.reciprocal(l_ref[...], approx=False)   # exact: once per bag, off crit path
        wsi = acc_ref[...] * inv_l                                        # [1, D]
        out_ref[...] = (jnp.dot(wsi, wct_ref[...],
                                preferred_element_type=jnp.float32)
                        + bc_ref[...])                                    # [1, C_pad]


def linear_with_mil_forward(tile_embeddings, tiles_original_locations, params,
                            *, n_tile=None):
    """Pallas implementation of LinearWithMIL.forward.

    tile_embeddings          : [B, N, D] (f32 or bf16 -- streamed in native dtype)
    tiles_original_locations : unused by attention-MIL pooling (API parity only)
    params                   : dict with V_t [D,A], w [A,1], Wc_t [D,C], b_c [1,C]
    returns                  : f32[B, C] logits
    """
    del tiles_original_locations  # attention pooling does not use tile locations
    B, N, D = tile_embeddings.shape
    A = params["V_t"].shape[1]
    C = params["Wc_t"].shape[1]

    LANE = 128
    A_pad = _round_up(A, LANE)
    C_pad = _round_up(C, LANE)

    h = tile_embeddings                      # NO astype / NO pad: zero extra HBM passes
    itemsize = jnp.dtype(h.dtype).itemsize
    row_align = 16 if itemsize < 4 else 8    # bf16 sublane pack needs 16-row tiles

    # --- N tiling: size the h double-buffer against a v7x-safe VMEM budget ---
    # ~8 MiB for 2x h buffers; remaining headroom covers the f32 promote of h,
    # the [NT, D] p*h temporary, the [NT, A_pad] hidden and resident weights.
    if n_tile is None:
        budget = 8 * 1024 * 1024
        nt_cap = max(256, (budget // (2 * D * itemsize)) // 256 * 256)
        n_tile = N if N <= nt_cap else nt_cap      # full-dim escape or 256-aligned
    NT = min(int(n_tile), N)                        # never exceed the array extent
    num_nk = pl.cdiv(N, NT)
    apply_mask = (N % NT) != 0                      # ragged last block handled in-kernel

    # --- lane-pad the (tiny) weights; exact: tanh(0)=0, zero weight cols -----
    V_t = jnp.pad(params["V_t"].astype(jnp.float32), ((0, 0), (0, A_pad - A)))
    w_row = jnp.pad(params["w"].astype(jnp.float32).reshape(1, A),
                    ((0, 0), (0, A_pad - A)))
    Wc_t = jnp.pad(params["Wc_t"].astype(jnp.float32), ((0, 0), (0, C_pad - C)))
    b_c = jnp.pad(params["b_c"].astype(jnp.float32).reshape(1, C),
                  ((0, 0), (0, C_pad - C)))

    kernel = functools.partial(mil_linear_kernel, n_valid=N, nt=NT,
                               apply_mask=apply_mask)

    grid_spec = pltpu.PrefetchScalarGridSpec(
        num_scalar_prefetch=0,
        grid=(B, num_nk),
        in_specs=[
            # batch dim squeezed -> kernel sees [NT, D]; streamed along the N axis
            pl.BlockSpec((None, NT, D), lambda b, nk: (b, nk, 0)),
            # weights: constant block index -> fetched once, stay resident
            pl.BlockSpec((D, A_pad), lambda b, nk: (0, 0)),
            pl.BlockSpec((1, A_pad), lambda b, nk: (0, 0)),
            pl.BlockSpec((D, C_pad), lambda b, nk: (0, 0)),
            pl.BlockSpec((1, C_pad), lambda b, nk: (0, 0)),
        ],
        # one lane-dense output block per bag -> B axis is truly parallel
        out_specs=pl.BlockSpec((None, 1, C_pad), lambda b, nk: (b, 0, 0)),
        scratch_shapes=[
            pltpu.VMEM((1, 1), jnp.float32),   # running max m
            pltpu.VMEM((1, 1), jnp.float32),   # running denominator l
            pltpu.VMEM((1, D), jnp.float32),   # running weighted sum acc
        ],
    )

    out = pl.pallas_call(
        kernel,
        out_shape=jax.ShapeDtypeStruct((B, 1, C_pad), jnp.float32),
        grid_spec=grid_spec,
        compiler_params=pltpu.CompilerParams(
            dimension_semantics=("parallel", "arbitrary"),
            vmem_limit_bytes=40 * 1024 * 1024),
    )(h, V_t, w_row, Wc_t, b_c)

    return out[:, 0, :C]


def reference_forward(tile_embeddings, params):
    """Pure-JAX reference of the same forward (correctness check)."""
    h = tile_embeddings.astype(jnp.float32)                               # [B, N, D]
    hidden = jnp.tanh(jnp.einsum("bnd,da->bna", h, params["V_t"]))        # [B, N, A]
    scores = jnp.einsum("bna,ao->bno", hidden, params["w"])[..., 0]       # [B, N]
    attn = jax.nn.softmax(scores, axis=-1)                                # [B, N]
    wsi = jnp.einsum("bn,bnd->bd", attn, h)                               # [B, D]
    return wsi @ params["Wc_t"] + params["b_c"]                           # [B, C]


if __name__ == "__main__":
    # Small, module-consistent shapes.  N deliberately not a multiple of the
    # explicit streaming tile so the ragged-last-block path is exercised.
    B, N, D, A, C = 2, 40, 32, 16, 4

    key = jax.random.PRNGKey(0)
    k_emb, k_loc, k_v, k_w, k_wc, k_bc = jax.random.split(key, 6)

    # bf16 tile embeddings: exercise the native-dtype (half-HBM-bytes) streaming path.
    tile_embeddings = jax.random.normal(k_emb, (B, N, D), dtype=jnp.float32
                                        ).astype(jnp.bfloat16)
    # Original tile locations (row, col) per tile — unused by attention pooling.
    tiles_original_locations = jax.random.randint(k_loc, (B, N, 2), 0, 64)

    # Parameter shapes mimic the module:
    #   attention-MIL: V [A, D] -> stored transposed [D, A]; w [A, 1]
    #   linear_classifier Linear(D, C): W [C, D] -> stored transposed [D, C]; b [1, C]
    params = {
        "V_t":  jax.random.normal(k_v,  (D, A), dtype=jnp.float32) * (1.0 / jnp.sqrt(D)),
        "w":    jax.random.normal(k_w,  (A, 1), dtype=jnp.float32) * (1.0 / jnp.sqrt(A)),
        "Wc_t": jax.random.normal(k_wc, (D, C), dtype=jnp.float32) * (1.0 / jnp.sqrt(D)),
        "b_c":  jax.random.normal(k_bc, (1, C), dtype=jnp.float32) * 0.01,
    }

    ref = reference_forward(tile_embeddings, params)

    # 1) Default tiling: whole bag in one block (full-dim escape, no mask).
    logits = linear_with_mil_forward(tile_embeddings, tiles_original_locations, params)
    logits = jax.block_until_ready(logits)
    assert logits.shape == (B, C)
    assert jnp.allclose(logits, ref, atol=1e-3, rtol=1e-3), \
        "Pallas output mismatch vs JAX reference (single-block path)"

    # 2) Streaming tiling: multiple N-tiles + ragged last block
    #    (exercises online softmax, the -inf score mask, and the p*h zeroing).
    logits_stream = linear_with_mil_forward(
        tile_embeddings, tiles_original_locations, params, n_tile=16)
    logits_stream = jax.block_until_ready(logits_stream)
    assert jnp.allclose(logits_stream, ref, atol=1e-3, rtol=1e-3), \
        "Pallas output mismatch vs JAX reference (streaming/ragged path)"

    print("KERNEL_OK")
</pallas_src>

<mosaic_0001>
module attributes {stable_mosaic.version = 11 : i64} {
  func.func @mil_linear_kernel(%arg0: i32, %arg1: i32, %arg2: memref<1x40x32xbf16, #tpu.memory_space<vmem>>, %arg3: memref<32x128xf32, #tpu.memory_space<vmem>>, %arg4: memref<1x128xf32, #tpu.memory_space<vmem>>, %arg5: memref<32x128xf32, #tpu.memory_space<vmem>>, %arg6: memref<1x128xf32, #tpu.memory_space<vmem>>, %arg7: memref<1x1x128xf32, #tpu.memory_space<vmem>>, %arg8: memref<1x1xf32, #tpu.memory_space<vmem>>, %arg9: memref<1x1xf32, #tpu.memory_space<vmem>>, %arg10: memref<1x32xf32, #tpu.memory_space<vmem>>) attributes {dimension_semantics = [#tpu.dimension_semantics<parallel>, #tpu.dimension_semantics<arbitrary>], iteration_bounds = array<i64: 2, 1>, scalar_prefetch = 0 : i64, scratch_operands = 3 : i64, tpu.core_type = #tpu.core_type<tc>, window_params = [{transform_indices = @transform_0, window_bounds = array<i64: 1, 40, 32>}, {pipeline_mode = #tpu.pipeline_mode<synchronous>, transform_indices = @transform_1, window_bounds = array<i64: 32, 128>}, {pipeline_mode = #tpu.pipeline_mode<synchronous>, transform_indices = @transform_2, window_bounds = array<i64: 1, 128>}, {pipeline_mode = #tpu.pipeline_mode<synchronous>, transform_indices = @transform_3, window_bounds = array<i64: 32, 128>}, {pipeline_mode = #tpu.pipeline_mode<synchronous>, transform_indices = @transform_4, window_bounds = array<i64: 1, 128>}, {transform_indices = @transform_5, window_bounds = array<i64: 1, 1, 128>}]} {
    %c0_i32 = arith.constant 0 : i32
    %0 = arith.cmpi eq, %arg1, %c0_i32 : i32
    %1 = arith.extui %0 : i1 to i32
    %c0_i32_0 = arith.constant 0 : i32
    %2 = arith.cmpi ne, %1, %c0_i32_0 : i32
    scf.if %2 {
      %cst_25 = arith.constant 0xFF800000 : f32
      %42 = vector.broadcast %cst_25 : f32 to vector<1x1xf32>
      %c0_26 = arith.constant 0 : index
      %c0_27 = arith.constant 0 : index
      %43 = vector.load %arg8[%c0_26, %c0_27] : memref<1x1xf32, #tpu.memory_space<vmem>>, vector<1x1xf32>
      tpu.vector_store %arg8[%c0_26, %c0_27], %42 {strides = array<i32>} : memref<1x1xf32, #tpu.memory_space<vmem>>, vector<1x1xf32>,
      %cst_28 = arith.constant 0.000000e+00 : f32
      %44 = vector.broadcast %cst_28 : f32 to vector<1x1xf32>
      %c0_29 = arith.constant 0 : index
      %c0_30 = arith.constant 0 : index
      %45 = vector.load %arg9[%c0_29, %c0_30] : memref<1x1xf32, #tpu.memory_space<vmem>>, vector<1x1xf32>
      tpu.vector_store %arg9[%c0_29, %c0_30], %44 {strides = array<i32>} : memref<1x1xf32, #tpu.memory_space<vmem>>, vector<1x1xf32>,
      %cst_31 = arith.constant 0.000000e+00 : f32
      %46 = vector.broadcast %cst_31 : f32 to vector<1x32xf32>
      %c0_32 = arith.constant 0 : index
      %c0_33 = arith.constant 0 : index
      %47 = vector.load %arg10[%c0_32, %c0_33] : memref<1x32xf32, #tpu.memory_space<vmem>>, vector<1x32xf32>
      tpu.vector_store %arg10[%c0_32, %c0_33], %46 {strides = array<i32>} : memref<1x32xf32, #tpu.memory_space<vmem>>, vector<1x32xf32>,
    } else {
    }
    %c0 = arith.constant 0 : index
    %c0_1 = arith.constant 0 : index
    %c0_2 = arith.constant 0 : index
    %3 = vector.load %arg2[%c0, %c0_1, %c0_2] : memref<1x40x32xbf16, #tpu.memory_space<vmem>>, vector<1x40x32xbf16>
    %4 = vector.shape_cast %3 : vector<1x40x32xbf16> to vector<40x32xbf16>
    %5 = arith.extf %4 : vector<40x32xbf16> to vector<40x32xf32>
    %c0_3 = arith.constant 0 : index
    %c0_4 = arith.constant 0 : index
    %6 = vector.load %arg3[%c0_3, %c0_4] : memref<32x128xf32, #tpu.memory_space<vmem>>, vector<32x128xf32>
    %cst = arith.constant dense<0.000000e+00> : vector<40x128xf32>
    %7 = tpu.matmul %5, %6, %cst {dimension_numbers = #tpu.dot_dimension_numbers<[1], [0], [0], [1], [0, 0, 1, 1], [], []>} : vector<40x32xf32>, vector<32x128xf32>, vector<40x128xf32> -> vector<40x128xf32>
    %8 = math.tanh %7 : vector<40x128xf32>
    %c0_5 = arith.constant 0 : index
    %c0_6 = arith.constant 0 : index
    %9 = vector.load %arg4[%c0_5, %c0_6] : memref<1x128xf32, #tpu.memory_space<vmem>>, vector<1x128xf32>
    %10 = vector.broadcast %9 : vector<1x128xf32> to vector<40x128xf32>
    %11 = arith.mulf %8, %10 : vector<40x128xf32>
    %cst_7 = arith.constant dense<0.000000e+00> : vector<40xf32>
    %12 = vector.multi_reduction <add>, %11, %cst_7 [1] : vector<40x128xf32> to vector<40xf32>
    %13 = vector.shape_cast %12 : vector<40xf32> to vector<40x1xf32>
    %c0_8 = arith.constant 0 : index
    %c0_9 = arith.constant 0 : index
    %14 = vector.load %arg8[%c0_8, %c0_9] : memref<1x1xf32, #tpu.memory_space<vmem>>, vector<1x1xf32>
    %cst_10 = arith.constant dense<0xFF800000> : vector<1xf32>
    %15 = vector.multi_reduction <maximumf>, %13, %cst_10 [0] : vector<40x1xf32> to vector<1xf32>
    %16 = vector.shape_cast %15 : vector<1xf32> to vector<1x1xf32>
    %17 = arith.maximumf %14, %16 : vector<1x1xf32>
    %18 = arith.subf %14, %17 : vector<1x1xf32>
    %19 = math.exp %18 : vector<1x1xf32>
    %20 = vector.broadcast %17 : vector<1x1xf32> to vector<40x1xf32>
    %21 = arith.subf %13, %20 : vector<40x1xf32>
    %22 = math.exp %21 : vector<40x1xf32>
    %c0_11 = arith.constant 0 : index
    %c0_12 = arith.constant 0 : index
    %23 = vector.load %arg9[%c0_11, %c0_12] : memref<1x1xf32, #tpu.memory_space<vmem>>, vector<1x1xf32>
    %24 = arith.mulf %19, %23 : vector<1x1xf32>
    %cst_13 = arith.constant dense<0.000000e+00> : vector<1xf32>
    %25 = vector.multi_reduction <add>, %22, %cst_13 [0] : vector<40x1xf32> to vector<1xf32>
    %26 = vector.shape_cast %25 : vector<1xf32> to vector<1x1xf32>
    %27 = arith.addf %24, %26 : vector<1x1xf32>
    %c0_14 = arith.constant 0 : index
    %c0_15 = arith.constant 0 : index
    %28 = vector.load %arg9[%c0_14, %c0_15] : memref<1x1xf32, #tpu.memory_space<vmem>>, vector<1x1xf32>
    tpu.vector_store %arg9[%c0_14, %c0_15], %27 {strides = array<i32>} : memref<1x1xf32, #tpu.memory_space<vmem>>, vector<1x1xf32>,
    %29 = vector.broadcast %22 : vector<40x1xf32> to vector<40x32xf32>
    %30 = arith.mulf %29, %5 : vector<40x32xf32>
    %c0_16 = arith.constant 0 : index
    %c0_17 = arith.constant 0 : index
    %31 = vector.load %arg10[%c0_16, %c0_17] : memref<1x32xf32, #tpu.memory_space<vmem>>, vector<1x32xf32>
    %32 = vector.broadcast %19 : vector<1x1xf32> to vector<1x32xf32>
    %33 = arith.mulf %32, %31 : vector<1x32xf32>
    %cst_18 = arith.constant dense<0.000000e+00> : vector<32xf32>
    %34 = vector.multi_reduction <add>, %30, %cst_18 [0] : vector<40x32xf32> to vector<32xf32>
    %35 = vector.shape_cast %34 : vector<32xf32> to vector<1x32xf32>
    %36 = arith.addf %33, %35 : vector<1x32xf32>
    %c0_19 = arith.constant 0 : index
    %c0_20 = arith.constant 0 : index
    %37 = vector.load %arg10[%c0_19, %c0_20] : memref<1x32xf32, #tpu.memory_space<vmem>>, vector<1x32xf32>
    tpu.vector_store %arg10[%c0_19, %c0_20], %36 {strides = array<i32>} : memref<1x32xf32, #tpu.memory_space<vmem>>, vector<1x32xf32>,
    %c0_21 = arith.constant 0 : index
    %c0_22 = arith.constant 0 : index
    %38 = vector.load %arg8[%c0_21, %c0_22] : memref<1x1xf32, #tpu.memory_space<vmem>>, vector<1x1xf32>
    tpu.vector_store %arg8[%c0_21, %c0_22], %17 {strides = array<i32>} : memref<1x1xf32, #tpu.memory_space<vmem>>, vector<1x1xf32>,
    %c0_i32_23 = arith.constant 0 : i32
    %39 = arith.cmpi eq, %arg1, %c0_i32_23 : i32
    %40 = arith.extui %39 : i1 to i32
    %c0_i32_24 = arith.constant 0 : i32
    %41 = arith.cmpi ne, %40, %c0_i32_24 : i32
    scf.if %41 {
      %c0_25 = arith.constant 0 : index
      %c0_26 = arith.constant 0 : index
      %42 = vector.load %arg9[%c0_25, %c0_26] : memref<1x1xf32, #tpu.memory_space<vmem>>, vector<1x1xf32>
      %43 = tpu.reciprocal %42 : vector<1x1xf32> -> vector<1x1xf32>
      %c0_27 = arith.constant 0 : index
      %c0_28 = arith.constant 0 : index
      %44 = vector.load %arg10[%c0_27, %c0_28] : memref<1x32xf32, #tpu.memory_space<vmem>>, vector<1x32xf32>
      %45 = vector.broadcast %43 : vector<1x1xf32> to vector<1x32xf32>
      %46 = arith.mulf %44, %45 : vector<1x32xf32>
      %c0_29 = arith.constant 0 : index
      %c0_30 = arith.constant 0 : index
      %47 = vector.load %arg5[%c0_29, %c0_30] : memref<32x128xf32, #tpu.memory_space<vmem>>, vector<32x128xf32>
      %cst_31 = arith.constant dense<0.000000e+00> : vector<1x128xf32>
      %48 = tpu.matmul %46, %47, %cst_31 {dimension_numbers = #tpu.dot_dimension_numbers<[1], [0], [0], [1], [0, 0, 1, 1], [], []>} : vector<1x32xf32>, vector<32x128xf32>, vector<1x128xf32> -> vector<1x128xf32>
      %c0_32 = arith.constant 0 : index
      %c0_33 = arith.constant 0 : index
      %49 = vector.load %arg6[%c0_32, %c0_33] : memref<1x128xf32, #tpu.memory_space<vmem>>, vector<1x128xf32>
      %50 = arith.addf %48, %49 : vector<1x128xf32>
      %c0_34 = arith.constant 0 : index
      %c0_35 = arith.constant 0 : index
      %c0_36 = arith.constant 0 : index
      %51 = vector.load %arg7[%c0_34, %c0_35, %c0_36] : memref<1x1x128xf32, #tpu.memory_space<vmem>>, vector<1x1x128xf32>
      %52 = vector.shape_cast %51 : vector<1x1x128xf32> to vector<1x128xf32>
      %53 = vector.shape_cast %50 : vector<1x128xf32> to vector<1x1x128xf32>
      tpu.vector_store %arg7[%c0_34, %c0_35, %c0_36], %53 {strides = array<i32>} : memref<1x1x128xf32, #tpu.memory_space<vmem>>, vector<1x1x128xf32>,
    } else {
    }
    return
  }
  func.func @transform_0(%arg0: i32, %arg1: i32) -> (i32, i32, i32) {
    %c0_i32 = arith.constant 0 : i32
    %c0_i32_0 = arith.constant 0 : i32
    return %arg0, %arg1, %c0_i32 : i32, i32, i32
  }
  func.func @transform_1(%arg0: i32, %arg1: i32) -> (i32, i32) {
    %c0_i32 = arith.constant 0 : i32
    %c0_i32_0 = arith.constant 0 : i32
    %c0_i32_1 = arith.constant 0 : i32
    return %c0_i32, %c0_i32_0 : i32, i32
  }
  func.func @transform_2(%arg0: i32, %arg1: i32) -> (i32, i32) {
    %c0_i32 = arith.constant 0 : i32
    %c0_i32_0 = arith.constant 0 : i32
    %c0_i32_1 = arith.constant 0 : i32
    return %c0_i32, %c0_i32_0 : i32, i32
  }
  func.func @transform_3(%arg0: i32, %arg1: i32) -> (i32, i32) {
    %c0_i32 = arith.constant 0 : i32
    %c0_i32_0 = arith.constant 0 : i32
    %c0_i32_1 = arith.constant 0 : i32
    return %c0_i32, %c0_i32_0 : i32, i32
  }
  func.func @transform_4(%arg0: i32, %arg1: i32) -> (i32, i32) {
    %c0_i32 = arith.constant 0 : i32
    %c0_i32_0 = arith.constant 0 : i32
    %c0_i32_1 = arith.constant 0 : i32
    return %c0_i32, %c0_i32_0 : i32, i32
  }
  func.func @transform_5(%arg0: i32, %arg1: i32) -> (i32, i32, i32) {
    %c0_i32 = arith.constant 0 : i32
    %c0_i32_0 = arith.constant 0 : i32
    %c0_i32_1 = arith.constant 0 : i32
    return %arg0, %c0_i32, %c0_i32_0 : i32, i32, i32
  }
}

</mosaic_0001>

<llo_original>
// kernel: tpu_custom_call.1
$region0: #{tpu_custom_call.1}
  #allocation0 [shape = 'u32[]', space=smem, size = 0x4, offset = 0x4, fixed_abs, tag = 'smem constant byte address 0x4 - core index']
  #allocation1 [shape = 'u32[144,128]{1,0:T(1,128)}', space=vmem, size = 0x12000, scoped, tag = 'internal scratch']
  #allocation2 [shape = 'f32[1,1]{1,0:T(1,128)}', space=vmem, size = 0x200, scoped, tag = 'scratch operand']
  #allocation3 [shape = 'f32[1,1]{1,0:T(1,128)}', space=vmem, size = 0x200, scoped, tag = 'scratch operand']
  #allocation4 [shape = 'f32[1,32]{1,0:T(1,128)}', space=vmem, size = 0x200, scoped, tag = 'scratch operand']
  %s0 = inlined_call_operand.vmem [shape: bf16[2,40,32], index: 0, kind: input, shape index: {}]
  %s1 = inlined_call_operand.vmem [shape: f32[32,128], index: 1, kind: input, shape index: {}]
  %s2 = inlined_call_operand.vmem [shape: f32[1,128], index: 2, kind: input, shape index: {}]
  %s3 = inlined_call_operand.vmem [shape: f32[32,128], index: 3, kind: input, shape index: {}]
  %s4 = inlined_call_operand.vmem [shape: f32[1,128], index: 4, kind: input, shape index: {}]
  %s5 = inlined_call_operand.hbm [shape: f32[2,1,128], index: 5, kind: output, shape index: {}]
  %s6 = sld [smem:[#allocation0]]
  $region61: #{tpu_custom_call.1} parent=0
    _
  %s8 = ssub.s32 1, %s6
  %s9 = scalar_select 0, %s8, %s6
  $region1: #{tpu_custom_call.1} parent=0
    #allocation5 [shape = 'u8[1024]{0}', space=vmem, size = 0x400, scoped, tag = 'output window, operand 0']
    #allocation6 [shape = 's32[2]{0}', space=sflag, size = 0x8, scoped, tag = 'scoped memory for tpu_custom_call.1']
    %10 = vsyncpa [#allocation6], 0
    %s11 = scalar_lea.sflag [#allocation6], 1
    %12 = vsyncpa %s11, 0
    loop: start=0, step=1, limit=4
    $region2: #{tpu_custom_call.1} parent=1 // loop_pre_header
      _
    $region3: #{tpu_custom_call.1} parent=1 // loop_header
      %s14 = sphi 0, %s18
      %p15 = scmp.ge.s32.totalorder %s14, 4
      %s21 = sphi 0, %s33
      %s22 = sphi 0, %s29
      %s23 = sphi 0, %s21
      %s24 = sphi 0, %s22
      %s25 = sphi 0, %s23
      %s26 = sphi 0, %s24
      %s38 = sphi 0, %s40
      %s41 = sphi 0, %s38
      %s42 = sphi 0, %s41
      %s58 = sphi 0, %s42
      %s62 = sphi 0, %s62
      %s64 = sphi 0, %s62
      %s65 = sphi 0, %s64
      %s79 = sphi 0, %s65
      %s83 = sphi 0, %s83
      %s85 = sphi 0, %s83
      %s86 = sphi 0, %s85
      %s100 = sphi 0, %s86
      %s104 = sphi 0, %s104
      %s106 = sphi 0, %s104
      %s107 = sphi 0, %s106
      %s121 = sphi 0, %s107
      %s125 = sphi 0, %s125
      %s127 = sphi 0, %s125
      %s128 = sphi 0, %s127
      %s142 = sphi 0, %s128
      %s148 = sphi 0, %s150
      %s151 = sphi 0, %s148
      %s152 = sphi 0, %s151
      %s168 = sphi 0, %s152
    $region4: #{tpu_custom_call.1} parent=1 // loop_header_branch
      %17 = sbr.rel (%p15) target = $region8
    $region5: #{tpu_custom_call.1} parent=1 // loop_body
      %s19 = ssub.s32 %s14, 1
      %s20 = ssub.s32 %s14, 2
      %s27 = sadd.s32 1, %s22
      %p28 = scmp.ge.s32.totalorder %s27, 1
      %s29 = scalar_select %p28, 0, %s27
      %s30 = sadd.s32 1, %s21
      %s31 = scalar_select %p28, %s30, %s21
      %p32 = scmp.ge.s32.totalorder %s31, 2
      %s33 = scalar_select %p32, 0, %s31
      %s34 = ssub.s32 %s21, %s33
      %s35 = ssub.s32 %s22, %s29
      %s36 = sor.u32 %s34, %s35
      %p37 = scmp.eq.s32.totalorder %s36, 0
      %s39 = sadd.s32 %s38, 1
      %s40 = scalar_select %p37, %s38, %s39
      %p43 = pneg %p37
      %p44 = scmp.eq.s32.totalorder %s14, 1
      %p45 = por %p43, %p44
      %p46 = scmp.ne.s32.totalorder %s38, %s41
      %p47 = scmp.eq.s32.totalorder %s14, 0
      %p48 = por %p46, %p47
      %p49 = scmp.ne.s32.totalorder %s38, %s41
      %p50 = scmp.eq.s32.totalorder %s19, 1
      %p51 = por %p49, %p50
      %p52 = scmp.ne.s32.totalorder %s41, %s42
      %p53 = scmp.eq.s32.totalorder %s19, 0
      %p54 = por %p52, %p53
      %p55 = scmp.ne.s32.totalorder %s41, %s42
      %p56 = scmp.eq.s32.totalorder %s20, 1
      %p57 = por %p55, %p56
      %p59 = scmp.ne.s32.totalorder %s42, %s58
      %p60 = scmp.eq.s32.totalorder %s20, 0
      %p61 = por %p59, %p60
      %s63 = sadd.s32 %s62, 1
      %p66 = scmp.eq.s32.totalorder %s14, 1
      %p67 = scmp.ne.s32.totalorder %s62, %s64
      %p68 = scmp.eq.s32.totalorder %s14, 0
      %p69 = por %p67, %p68
      %p70 = scmp.ne.s32.totalorder %s62, %s64
      %p71 = scmp.eq.s32.totalorder %s19, 1
      %p72 = por %p70, %p71
      %p73 = scmp.ne.s32.totalorder %s64, %s65
      %p74 = scmp.eq.s32.totalorder %s19, 0
      %p75 = por %p73, %p74
      %p76 = scmp.ne.s32.totalorder %s64, %s65
      %p77 = scmp.eq.s32.totalorder %s20, 1
      %p78 = por %p76, %p77
      %p80 = scmp.ne.s32.totalorder %s65, %s79
      %p81 = scmp.eq.s32.totalorder %s20, 0
      %p82 = por %p80, %p81
      %s84 = sadd.s32 %s83, 1
      %p87 = scmp.eq.s32.totalorder %s14, 1
      %p88 = scmp.ne.s32.totalorder %s83, %s85
      %p89 = scmp.eq.s32.totalorder %s14, 0
      %p90 = por %p88, %p89
      %p91 = scmp.ne.s32.totalorder %s83, %s85
      %p92 = scmp.eq.s32.totalorder %s19, 1
      %p93 = por %p91, %p92
      %p94 = scmp.ne.s32.totalorder %s85, %s86
      %p95 = scmp.eq.s32.totalorder %s19, 0
      %p96 = por %p94, %p95
      %p97 = scmp.ne.s32.totalorder %s85, %s86
      %p98 = scmp.eq.s32.totalorder %s20, 1
      %p99 = por %p97, %p98
      %p101 = scmp.ne.s32.totalorder %s86, %s100
      %p102 = scmp.eq.s32.totalorder %s20, 0
      %p103 = por %p101, %p102
      %s105 = sadd.s32 %s104, 1
      %p108 = scmp.eq.s32.totalorder %s14, 1
      %p109 = scmp.ne.s32.totalorder %s104, %s106
      %p110 = scmp.eq.s32.totalorder %s14, 0
      %p111 = por %p109, %p110
      %p112 = scmp.ne.s32.totalorder %s104, %s106
      %p113 = scmp.eq.s32.totalorder %s19, 1
      %p114 = por %p112, %p113
      %p115 = scmp.ne.s32.totalorder %s106, %s107
      %p116 = scmp.eq.s32.totalorder %s19, 0
      %p117 = por %p115, %p116
      %p118 = scmp.ne.s32.totalorder %s106, %s107
      %p119 = scmp.eq.s32.totalorder %s20, 1
      %p120 = por %p118, %p119
      %p122 = scmp.ne.s32.totalorder %s107, %s121
      %p123 = scmp.eq.s32.totalorder %s20, 0
      %p124 = por %p122, %p123
      %s126 = sadd.s32 %s125, 1
      %p129 = scmp.eq.s32.totalorder %s14, 1
      %p130 = scmp.ne.s32.totalorder %s125, %s127
      %p131 = scmp.eq.s32.totalorder %s14, 0
      %p132 = por %p130, %p131
      %p133 = scmp.ne.s32.totalorder %s125, %s127
      %p134 = scmp.eq.s32.totalorder %s19, 1
      %p135 = por %p133, %p134
      %p136 = scmp.ne.s32.totalorder %s127, %s128
      %p137 = scmp.eq.s32.totalorder %s19, 0
      %p138 = por %p136, %p137
      %p139 = scmp.ne.s32.totalorder %s127, %s128
      %p140 = scmp.eq.s32.totalorder %s20, 1
      %p141 = por %p139, %p140
      %p143 = scmp.ne.s32.totalorder %s128, %s142
      %p144 = scmp.eq.s32.totalorder %s20, 0
      %p145 = por %p143, %p144
      %s146 = ssub.s32 %s21, %s33
      %p147 = scmp.eq.s32.totalorder %s146, 0
      %s149 = sadd.s32 %s148, 1
      %s150 = scalar_select %p147, %s148, %s149
      %p153 = pneg %p147
      %p154 = scmp.eq.s32.totalorder %s14, 1
      %p155 = por %p153, %p154
      %p156 = scmp.ne.s32.totalorder %s148, %s151
      %p157 = scmp.eq.s32.totalorder %s14, 0
      %p158 = por %p156, %p157
      %p159 = scmp.ne.s32.totalorder %s148, %s151
      %p160 = scmp.eq.s32.totalorder %s19, 1
      %p161 = por %p159, %p160
      %p162 = scmp.ne.s32.totalorder %s151, %s152
      %p163 = scmp.eq.s32.totalorder %s19, 0
      %p164 = por %p162, %p163
      %p165 = scmp.ne.s32.totalorder %s151, %s152
      %p166 = scmp.eq.s32.totalorder %s20, 1
      %p167 = por %p165, %p166
      %p169 = scmp.ne.s32.totalorder %s152, %s168
      %p170 = scmp.eq.s32.totalorder %s20, 0
      %p171 = por %p169, %p170
      %p172 = scmp.le.s32.totalorder 1, %s14
      %p173 = scmp.lt.s32.totalorder %s14, 3
      %p174 = pnand %p172, %p173
      %p175 = pneg %p174
      // Predicated region
      $region9: #{tpu_custom_call.1} parent=5 // pred_check
        _
      $region10: #{tpu_custom_call.1} parent=5 // pred_check_branch
        %177 = sbr.rel (%p174) target = $region12
      $region11: #{tpu_custom_call.1} parent=5 // pred_region
        %s178 = ssub.s32 %s14, 1
        // Predicated region
        $region13: #{tpu_custom_call.1} parent=11 // pred_check
          %p179 = pneg %p75
        $region14: #{tpu_custom_call.1} parent=11 // pred_check_branch
          %181 = sbr.rel (%p179) target = $region16
        $region15: #{tpu_custom_call.1} parent=11 // pred_region
          _
        $region16: #{tpu_custom_call.1} parent=11 // pred_fallthru
          _
        // Predicated region
        $region17: #{tpu_custom_call.1} parent=11 // pred_check
          %p182 = pneg %p96
        $region18: #{tpu_custom_call.1} parent=11 // pred_check_branch
          %184 = sbr.rel (%p182) target = $region20
        $region19: #{tpu_custom_call.1} parent=11 // pred_region
          _
        $region20: #{tpu_custom_call.1} parent=11 // pred_fallthru
          _
        // Predicated region
        $region21: #{tpu_custom_call.1} parent=11 // pred_check
          %p185 = pneg %p117
        $region22: #{tpu_custom_call.1} parent=11 // pred_check_branch
          %187 = sbr.rel (%p185) target = $region24
        $region23: #{tpu_custom_call.1} parent=11 // pred_region
          _
        $region24: #{tpu_custom_call.1} parent=11 // pred_fallthru
          _
        // Predicated region
        $region25: #{tpu_custom_call.1} parent=11 // pred_check
          %p188 = pneg %p138
        $region26: #{tpu_custom_call.1} parent=11 // pred_check_branch
          %190 = sbr.rel (%p188) target = $region28
        $region27: #{tpu_custom_call.1} parent=11 // pred_region
          _
        $region28: #{tpu_custom_call.1} parent=11 // pred_fallthru
          _
      $region12: #{tpu_custom_call.1} parent=5 // pred_fallthru
        _
      %p191 = scmp.lt.s32.totalorder %s14, 2
      // Predicated region
      $region29: #{tpu_custom_call.1} parent=5 // pred_check
        %p192 = pneg %p191
      $region30: #{tpu_custom_call.1} parent=5 // pred_check_branch
        %194 = sbr.rel (%p192) target = $region32
      $region31: #{tpu_custom_call.1} parent=5 // pred_region
        // Predicated region
        $region33: #{tpu_custom_call.1} parent=31 // pred_check
          %p195 = pneg %p48
        $region34: #{tpu_custom_call.1} parent=31 // pred_check_branch
          %197 = sbr.rel (%p195) target = $region36
        $region35: #{tpu_custom_call.1} parent=31 // pred_region
          %s198 = smul.u32 5, %s22
          %p199 = scmp.lt.s32.totalorder %s21, 1
          %s200 = scalar_select %p199, %s21, 1
          %p201 = scmp.lt.s32.totalorder %s198, 4
          %s202 = scalar_select %p201, %s198, 4
          %s203 = smul.addr %s200, 5
          %s204 = sadd.s32 %s202, %s203
          %s205 = smul.addr %s204, 4
          %s206 = scalar_lea.vmem %s0, %s205
          %s207 = smul.u32 5, %s22
        $region36: #{tpu_custom_call.1} parent=31 // pred_fallthru
          _
      $region32: #{tpu_custom_call.1} parent=5 // pred_fallthru
        _
      %p208 = scmp.le.s32.totalorder 1, %s14
      %p209 = scmp.lt.s32.totalorder %s14, 3
      %p210 = pnand %p208, %p209
      %p211 = pneg %p210
      // Predicated region
      $region37: #{tpu_custom_call.1} parent=5 // pred_check
        _
      $region38: #{tpu_custom_call.1} parent=5 // pred_check_branch
        %213 = sbr.rel (%p210) target = $region40
      $region39: #{tpu_custom_call.1} parent=5 // pred_region
        %s214 = ssub.s32 %s14, 1
        %s215 = smul.u32 5, %s24
        %p216 = scmp.lt.s32.totalorder %s23, 1
        %s217 = scalar_select %p216, %s23, 1
        %p218 = scmp.lt.s32.totalorder %s215, 4
        %s219 = scalar_select %p218, %s215, 4
        %s220 = smul.addr %s217, 5
        %s221 = sadd.s32 %s219, %s220
        %s222 = smul.addr %s221, 4
        %s223 = scalar_lea.vmem %s0, %s222
        %p224 = pneg %p54
        %p225 = pneg %p51
        %p226 = pneg %p75
        %p227 = pneg %p72
        %p228 = pneg %p96
        %p229 = pneg %p93
        %p230 = pneg %p117
        %p231 = pneg %p114
        %p232 = pneg %p138
        %p233 = pneg %p135
        %p234 = pneg %p164
        %p235 = pneg %p161
        %s236 = sand.u32 %s151, 1
        %s237 = scalar_lea.sflag [#allocation6], %s236
        %s238 = sand.u32 %s151, 1
        %s239 = scalar_lea.vmem [#allocation5], %s238
        %s240 = smul.u32 5, %s24
        %p241 = scmp.lt.s32.totalorder %s23, 1
        %s242 = scalar_select %p241, %s23, 1
        %p243 = scmp.lt.s32.totalorder %s240, 4
        %s244 = scalar_select %p243, %s240, 4
        %s245 = smul.addr %s242, 5
        %s246 = sadd.s32 %s244, %s245
        %s247 = smul.addr %s246, 4
        %s248 = scalar_lea.vmem %s0, %s247
        %s249 = smul.u32 5, %s24
        %p250 = scmp.eq.s32.totalorder %s24, 0
        // Predicated region
        $region41: #{tpu_custom_call.1} parent=39 // pred_check
          %p251 = pneg %p250
        $region42: #{tpu_custom_call.1} parent=39 // pred_check_branch
          %253 = sbr.rel (%p251) target = $region44
        $region43: #{tpu_custom_call.1} parent=39 // pred_region
          %vm254 = vcmask 0
          %255 = vst.msk [vmem:[#allocation2] sm:$0x1] %vm254, -inf
          %256 = vst.msk [vmem:[#allocation3] sm:$0x1] %vm254, 0.0
          %vm257 = vcmask 253952
          %258 = vst.msk [vmem:[#allocation4] sm:$0x1] %vm257, 0.0
        $region44: #{tpu_custom_call.1} parent=39 // pred_fallthru
          _
        %v259 = vld [vmem:[%s248] sm:$0xf]
        %v260 = vld [vmem:[%s248 + $0x4] sm:$0xf]
        %v261 = vld [vmem:[%s248 + $0x8] sm:$0xf]
        %v262 = vld [vmem:[%s248 + $0xc] sm:$0xf]
        %v263 = vld [vmem:[%s248 + $0x10] sm:$0xf]
        %v264 = vunpack.c.l.bf16 %v259
        %v265 = vunpack.c.l.bf16 %v260
        %v266 = vunpack.c.l.bf16 %v261
        %v267 = vunpack.c.l.bf16 %v262
        %v268 = vunpack.c.l.bf16 %v263
        %v269 = vld [vmem:[%s1] sm:$0xff]
        %v270 = vld [vmem:[%s1 + $0x8] sm:$0xff]
        %v271 = vld [vmem:[%s1 + $0x10] sm:$0xff]
        %v272 = vld [vmem:[%s1 + $0x18] sm:$0xff]
        %vm273 = vcmask 261120
        %v275 = vsel %vm273, %v264, 0
        %v278 = vsel %vm273, %v265, 0
        %v281 = vsel %vm273, %v266, 0
        %v284 = vsel %vm273, %v267, 0
        %v287 = vsel %vm273, %v268, 0
        %289 = vmatprep.subr.mxu0 0.0
        %290 = vmatpush1.msra.mxu0 0.0
        %291 = vmatprep.subr.mxu0 0.0
        %292 = vmatpush1.msra.mxu0 0.0
        %293 = vmatprep.subr.mxu0 0.0
        %294 = vmatpush1.msra.mxu0 0.0
        %295 = vmatprep.subr.mxu0 0.0
        %296 = vmatpush1.msra.mxu0 0.0
        %297 = vmatprep.subr.mxu0 0.0
        %298 = vmatpush1.msra.mxu0 0.0
        %299 = vmatprep.subr.mxu0 0.0
        %300 = vmatpush1.msra.mxu0 0.0
        %301 = vmatprep.subr.mxu0 0.0
        %302 = vmatpush1.msra.mxu0 0.0
        %303 = vmatprep.subr.mxu0 0.0
        %304 = vmatpush1.msra.mxu0 0.0
        %305 = vmatprep.subr.mxu0 0.0
        %306 = vmatpush1.msra.mxu0 0.0
        %307 = vmatprep.subr.mxu0 0.0
        %308 = vmatpush1.msra.mxu0 0.0
        %309 = vmatprep.subr.mxu0 0.0
        %310 = vmatpush1.msra.mxu0 0.0
        %311 = vmatprep.subr.mxu0 0.0
        %312 = vmatpush1.msra.mxu0 0.0
        %313 = vmatprep.subr.mxu0 0.0
        %314 = vmatpush1.msra.mxu0 %v272
        %315 = vmatprep.subr.mxu0 0.0
        %316 = vmatpush1.msra.mxu0 %v271
        %317 = vmatprep.subr.mxu0 0.0
        %318 = vmatpush1.msra.mxu0 %v270
        %319 = vmatprep.subr.mxu0 0.0
        %320 = vmatpush1.msra.mxu0 %v269
        %321 = vmatprep.subr.mxu0 0.0
        %322 = vmatpush2.msra.mxu0 0.0
        %323 = vmatprep.subr.mxu0 0.0
        %324 = vmatpush2.msra.mxu0 0.0
        %325 = vmatprep.subr.mxu0 0.0
        %326 = vmatpush2.msra.mxu0 0.0
        %327 = vmatprep.subr.mxu0 0.0
        %328 = vmatpush2.msra.mxu0 0.0
        %329 = vmatprep.subr.mxu0 0.0
        %330 = vmatpush2.msra.mxu0 0.0
        %331 = vmatprep.subr.mxu0 0.0
        %332 = vmatpush2.msra.mxu0 0.0
        %333 = vmatprep.subr.mxu0 0.0
        %334 = vmatpush2.msra.mxu0 0.0
        %335 = vmatprep.subr.mxu0 0.0
        %336 = vmatpush2.msra.mxu0 0.0
        %337 = vmatprep.subr.mxu0 0.0
        %338 = vmatpush2.msra.mxu0 0.0
        %339 = vmatprep.subr.mxu0 0.0
        %340 = vmatpush2.msra.mxu0 0.0
        %341 = vmatprep.subr.mxu0 0.0
        %342 = vmatpush2.msra.mxu0 0.0
        %343 = vmatprep.subr.mxu0 0.0
        %344 = vmatpush2.msra.mxu0 0.0
        %345 = vmatprep.subr.mxu0 0.0
        %346 = vmatpush2.msra.mxu0 0.0
        %347 = vmatprep.subr.mxu0 0.0
        %348 = vmatpush2.msra.mxu0 0.0
        %349 = vmatprep.subr.mxu0 0.0
        %350 = vmatpush2.msra.mxu0 0.0
        %351 = vmatprep.subr.mxu0 0.0
        %352 = vmatpush2.msra.mxu0 0.0
        %353 = vmatprep.mubr.f32.mxu0 0.0
        %354 = vmatmul.mubr.f32.gmra.mxu0 %v275
        %v355 = vpop.f32.mrf.mxu0
        %v356 = vadd.f32 0.0, %v355
        %v357 = vpop.f32.mrf.mxu0
        %358 = vmatprep.mubr.f32.mxu0 0.0
        %359 = vmatmul.mubr.f32.gmra.mxu0 %v278
        %v360 = vpop.f32.mrf.mxu0
        %v361 = vadd.f32 0.0, %v360
        %v362 = vpop.f32.mrf.mxu0
        %363 = vmatprep.mubr.f32.mxu0 0.0
        %364 = vmatmul.mubr.f32.gmra.mxu0 %v281
        %v365 = vpop.f32.mrf.mxu0
        %v366 = vadd.f32 0.0, %v365
        %v367 = vpop.f32.mrf.mxu0
        %368 = vmatprep.mubr.f32.mxu0 0.0
        %369 = vmatmul.mubr.f32.gmra.mxu0 %v284
        %v370 = vpop.f32.mrf.mxu0
        %v371 = vadd.f32 0.0, %v370
        %v372 = vpop.f32.mrf.mxu0
        %373 = vmatprep.mubr.f32.mxu0 0.0
        %374 = vmatmul.mubr.f32.gmra.mxu0 %v287
        %v375 = vpop.f32.mrf.mxu0
        %v376 = vadd.f32 0.0, %v375
        %v377 = vpop.f32.mrf.mxu0
        %378 = vdwg.mxu0
        %v379 = vtanh.pop %v356
        %v380 = vtanh.pop %v361
        %v381 = vtanh.pop %v366
        %v382 = vtanh.pop %v371
        %v383 = vtanh.pop %v376
        %v384 = vld [vmem:[%s2] sm:$0x1]
        %v386 = vlaneseq
        %v387 = vshrl.u32 %v386, 7
        %v388 = vsub.s32 0, %v387
        %v389 = vrot.slane %v384, %v388
        %v391 = vmul.f32 %v379, %v389
        %v392 = vmul.f32 %v380, %v389
        %v393 = vmul.f32 %v381, %v389
        %v394 = vmul.f32 %v382, %v389
        %v395 = vmul.f32 %v383, %v389
        %396 = vadd.xlane.f32.xlu0 %v391
        %v397 = vpop.xlane.xlu0 %396
        %398 = vadd.xlane.f32.xlu0 %v392
        %v399 = vpop.xlane.xlu0 %398
        %400 = vadd.xlane.f32.xlu0 %v393
        %v401 = vpop.xlane.xlu0 %400
        %402 = vadd.xlane.f32.xlu0 %v394
        %v403 = vpop.xlane.xlu0 %402
        %404 = vadd.xlane.f32.xlu0 %v395
        %v405 = vpop.xlane.xlu0 %404
        %v406 = vld [vmem:[#allocation2] sm:$0x1]
        %v407 = vmax.f32 %v397, %v405
        %v408 = vmax.f32 %v407, %v399
        %v409 = vmax.f32 %v401, %v403
        %v410 = vmax.f32 %v408, %v409
        %v411 = vrot.slane %v410, 4
        %v412 = vmax.f32 %v410, %v411
        %v413 = vrot.slane %v412, 2
        %v414 = vmax.f32 %v412, %v413
        %v415 = vrot.slane %v414, 1
        %v416 = vmax.f32 %v414, %v415
        %v417 = vmax.f32 %v406, %v416
        %v418 = vsub.f32 %v406, %v417
        %v419 = vmul.f32 %v418, 1.442695
        %v420 = vpow.pop %v419
        %v422 = vlaneseq
        %v423 = vshrl.u32 %v422, 7
        %v424 = vsub.s32 0, %v423
        %v425 = vrot.slane %v417, %v424
        %v427 = vsub.f32 %v397, %v425
        %v428 = vsub.f32 %v399, %v425
        %v429 = vsub.f32 %v401, %v425
        %v430 = vsub.f32 %v403, %v425
        %v431 = vsub.f32 %v405, %v425
        %v432 = vmul.f32 %v427, 1.442695
        %v433 = vpow.pop %v432
        %v434 = vmul.f32 %v428, 1.442695
        %v435 = vpow.pop %v434
        %v436 = vmul.f32 %v429, 1.442695
        %v437 = vpow.pop %v436
        %v438 = vmul.f32 %v430, 1.442695
        %v439 = vpow.pop %v438
        %v440 = vmul.f32 %v431, 1.442695
        %v441 = vpow.pop %v440
        %v442 = vld [vmem:[#allocation3] sm:$0x1]
        %v443 = vmul.f32 %v420, %v442
        %vm444 = vcmask 7168
        %v445 = vsel %vm444, %v433, 0.0
        %v446 = vsel %vm444, %v435, 0.0
        %v447 = vadd.f32 %v445, %v446
        %v448 = vsel %vm444, %v437, 0.0
        %v449 = vadd.f32 %v447, %v448
        %v450 = vsel %vm444, %v439, 0.0
        %v451 = vadd.f32 %v449, %v450
        %v452 = vsel %vm444, %v441, 0.0
        %v453 = vadd.f32 %v451, %v452
        %v454 = vrot.slane %v453, 4
        %v455 = vadd.f32 %v453, %v454
        %v456 = vrot.slane %v455, 2
        %v457 = vadd.f32 %v455, %v456
        %v458 = vrot.slane %v457, 1
        %v459 = vadd.f32 %v457, %v458
        %v460 = vadd.f32 %v443, %v459
        %vm461 = vcmask 0
        %462 = vst.msk [vmem:[#allocation3] sm:$0x1] %vm461, %v460
        %464 = vset.pattern.permute.xlu0 0
        %465 = vperm.xlu0 %464, %v433
        %v466 = vpop.permute.xlu0 %465
        %469 = vset.pattern.permute.xlu0 0
        %470 = vperm.xlu0 %469, %v435
        %v471 = vpop.permute.xlu0 %470
        %474 = vset.pattern.permute.xlu0 0
        %475 = vperm.xlu0 %474, %v437
        %v476 = vpop.permute.xlu0 %475
        %479 = vset.pattern.permute.xlu0 0
        %480 = vperm.xlu0 %479, %v439
        %v481 = vpop.permute.xlu0 %480
        %484 = vset.pattern.permute.xlu0 0
        %485 = vperm.xlu0 %484, %v441
        %v486 = vpop.permute.xlu0 %485
        %v488 = vmul.f32 %v466, %v264
        %v489 = vmul.f32 %v471, %v265
        %v490 = vmul.f32 %v476, %v266
        %v491 = vmul.f32 %v481, %v267
        %v492 = vmul.f32 %v486, %v268
        %v493 = vld [vmem:[#allocation4] sm:$0x1]
        %495 = vset.pattern.permute.xlu0 0
        %496 = vperm.xlu0 %495, %v420
        %v497 = vpop.permute.xlu0 %496
        %v499 = vlaneseq
        %v500 = vshrl.u32 %v499, 7
        %v501 = vsub.s32 0, %v500
        %v502 = vrot.slane %v497, %v501
        %v503 = vmul.f32 %v502, %v493
        %v504 = vsel %vm273, %v488, 0.0
        %v505 = vsel %vm273, %v489, 0.0
        %v506 = vadd.f32 %v504, %v505
        %v507 = vsel %vm273, %v490, 0.0
        %v508 = vadd.f32 %v506, %v507
        %v509 = vsel %vm273, %v491, 0.0
        %v510 = vadd.f32 %v508, %v509
        %v511 = vsel %vm273, %v492, 0.0
        %v512 = vadd.f32 %v510, %v511
        %v513 = vrot.slane %v512, 4
        %v514 = vadd.f32 %v512, %v513
        %v515 = vrot.slane %v514, 2
        %v516 = vadd.f32 %v514, %v515
        %v517 = vrot.slane %v516, 1
        %v518 = vadd.f32 %v516, %v517
        %v519 = vadd.f32 %v503, %v518
        %vm520 = vcmask 253952
        %521 = vst.msk [vmem:[#allocation4] sm:$0x1] %vm520, %v519
        %522 = vst.msk [vmem:[#allocation2] sm:$0x1] %vm461, %v417
        // Predicated region
        $region45: #{tpu_custom_call.1} parent=39 // pred_check
          %p523 = pneg %p250
        $region46: #{tpu_custom_call.1} parent=39 // pred_check_branch
          %525 = sbr.rel (%p523) target = $region48
        $region47: #{tpu_custom_call.1} parent=39 // pred_region
          %v526 = vld [vmem:[#allocation3] sm:$0x1]
          %v527 = vrcp.pop %v526
          %v528 = vld [vmem:[#allocation4] sm:$0x1]
          %530 = vset.pattern.permute.xlu0 0
          %531 = vperm.xlu0 %530, %v527
          %v532 = vpop.permute.xlu0 %531
          %v534 = vlaneseq
          %v535 = vshrl.u32 %v534, 7
          %v536 = vsub.s32 0, %v535
          %v537 = vrot.slane %v532, %v536
          %v538 = vmul.f32 %v528, %v537
          %v539 = vld [vmem:[%s3] sm:$0xff]
          %v540 = vld [vmem:[%s3 + $0x8] sm:$0xff]
          %v541 = vld [vmem:[%s3 + $0x10] sm:$0xff]
          %v542 = vld [vmem:[%s3 + $0x18] sm:$0xff]
          %v543 = vld [vmem:[%s4] sm:$0x1]
          %v545 = vsel %vm273, %v538, 0
          %547 = vmatprep.subr.mxu0 0.0
          %548 = vmatpush1.msra.mxu0 0.0
          %549 = vmatprep.subr.mxu0 0.0
          %550 = vmatpush1.msra.mxu0 0.0
          %551 = vmatprep.subr.mxu0 0.0
          %552 = vmatpush1.msra.mxu0 0.0
          %553 = vmatprep.subr.mxu0 0.0
          %554 = vmatpush1.msra.mxu0 0.0
          %555 = vmatprep.subr.mxu0 0.0
          %556 = vmatpush1.msra.mxu0 0.0
          %557 = vmatprep.subr.mxu0 0.0
          %558 = vmatpush1.msra.mxu0 0.0
          %559 = vmatprep.subr.mxu0 0.0
          %560 = vmatpush1.msra.mxu0 0.0
          %561 = vmatprep.subr.mxu0 0.0
          %562 = vmatpush1.msra.mxu0 0.0
          %563 = vmatprep.subr.mxu0 0.0
          %564 = vmatpush1.msra.mxu0 0.0
          %565 = vmatprep.subr.mxu0 0.0
          %566 = vmatpush1.msra.mxu0 0.0
          %567 = vmatprep.subr.mxu0 0.0
          %568 = vmatpush1.msra.mxu0 0.0
          %569 = vmatprep.subr.mxu0 0.0
          %570 = vmatpush1.msra.mxu0 0.0
          %571 = vmatprep.subr.mxu0 0.0
          %572 = vmatpush1.msra.mxu0 %v542
          %573 = vmatprep.subr.mxu0 0.0
          %574 = vmatpush1.msra.mxu0 %v541
          %575 = vmatprep.subr.mxu0 0.0
          %576 = vmatpush1.msra.mxu0 %v540
          %577 = vmatprep.subr.mxu0 0.0
          %578 = vmatpush1.msra.mxu0 %v539
          %579 = vmatprep.subr.mxu0 0.0
          %580 = vmatpush2.msra.mxu0 0.0
          %581 = vmatprep.subr.mxu0 0.0
          %582 = vmatpush2.msra.mxu0 0.0
          %583 = vmatprep.subr.mxu0 0.0
          %584 = vmatpush2.msra.mxu0 0.0
          %585 = vmatprep.subr.mxu0 0.0
          %586 = vmatpush2.msra.mxu0 0.0
          %587 = vmatprep.subr.mxu0 0.0
          %588 = vmatpush2.msra.mxu0 0.0
          %589 = vmatprep.subr.mxu0 0.0
          %590 = vmatpush2.msra.mxu0 0.0
          %591 = vmatprep.subr.mxu0 0.0
          %592 = vmatpush2.msra.mxu0 0.0
          %593 = vmatprep.subr.mxu0 0.0
          %594 = vmatpush2.msra.mxu0 0.0
          %595 = vmatprep.subr.mxu0 0.0
          %596 = vmatpush2.msra.mxu0 0.0
          %597 = vmatprep.subr.mxu0 0.0
          %598 = vmatpush2.msra.mxu0 0.0
          %599 = vmatprep.subr.mxu0 0.0
          %600 = vmatpush2.msra.mxu0 0.0
          %601 = vmatprep.subr.mxu0 0.0
          %602 = vmatpush2.msra.mxu0 0.0
          %603 = vmatprep.subr.mxu0 0.0
          %604 = vmatpush2.msra.mxu0 0.0
          %605 = vmatprep.subr.mxu0 0.0
          %606 = vmatpush2.msra.mxu0 0.0
          %607 = vmatprep.subr.mxu0 0.0
          %608 = vmatpush2.msra.mxu0 0.0
          %609 = vmatprep.subr.mxu0 0.0
          %610 = vmatpush2.msra.mxu0 0.0
          %611 = vmatprep.mubr.f32.mxu0 0.0
          %612 = vmatmul.mubr.f32.gmra.mxu0 %v545
          %v613 = vpop.f32.mrf.mxu0
          %v614 = vadd.f32 %v543, %v613
          %v615 = vpop.f32.mrf.mxu0
          %616 = vdwg.mxu0
          %617 = vst [vmem:[%s239] sm:$0x1] %v614
        $region48: #{tpu_custom_call.1} parent=39 // pred_fallthru
          _
        %s618 = sand.u32 %s151, 1
        %s619 = scalar_lea.sflag [#allocation6], %s618
        %s620 = sand.u32 %s151, 1
        %s621 = scalar_lea.vmem [#allocation5], %s620
        // Predicated region
        $region49: #{tpu_custom_call.1} parent=39 // pred_check
          %p622 = pneg %p161
        $region50: #{tpu_custom_call.1} parent=39 // pred_check_branch
          %624 = sbr.rel (%p622) target = $region52
        $region51: #{tpu_custom_call.1} parent=39 // pred_region
          %s626 = ssub.s32 16, 16
          %627 = vsyncadd %s619, %s626
          %s628 = smul.addr %s23, 16
          %s629 = scalar_lea.hbm %s5, %s628
          %s631 = sshll.u32 %s621, 4
          %s632 = int_to_ptr.vmem [resolvable:$true] %s631
          %634 = dma.vmem_to_hbm [thread:$0]  %s632, 16, %s629, %s619
        $region52: #{tpu_custom_call.1} parent=39 // pred_fallthru
          _
      $region40: #{tpu_custom_call.1} parent=5 // pred_fallthru
        _
      %p635 = scmp.le.s32.totalorder 2, %s14
      // Predicated region
      $region53: #{tpu_custom_call.1} parent=5 // pred_check
        %p636 = pneg %p635
      $region54: #{tpu_custom_call.1} parent=5 // pred_check_branch
        %638 = sbr.rel (%p636) target = $region56
      $region55: #{tpu_custom_call.1} parent=5 // pred_region
        %s639 = ssub.s32 %s14, 2
        // Predicated region
        $region57: #{tpu_custom_call.1} parent=55 // pred_check
          %p640 = pneg %p167
        $region58: #{tpu_custom_call.1} parent=55 // pred_check_branch
          %642 = sbr.rel (%p640) target = $region60
        $region59: #{tpu_custom_call.1} parent=55 // pred_region
          %s643 = sand.u32 %s152, 1
          %s644 = scalar_lea.sflag [#allocation6], %s643
          %s645 = sand.u32 %s152, 1
          %s646 = scalar_lea.vmem [#allocation5], %s645
          %647 = dma.done %s644, 16
        $region60: #{tpu_custom_call.1} parent=55 // pred_fallthru
          _
      $region56: #{tpu_custom_call.1} parent=5 // pred_fallthru
        _
    $region6: #{tpu_custom_call.1} parent=1 // loop_footer
      %s18 = sadd.s32 1, %s14
    $region7: #{tpu_custom_call.1} parent=1 // loop_footer_branch
      %13 = sbr.rel target = $region3
    $region8: #{tpu_custom_call.1} parent=1 // loop_exit
      _
    %648 = vsyncpa [#allocation6], 1
    %s649 = scalar_lea.sflag [#allocation6], 1
    %650 = vsyncpa %s649, 1

</llo_original>
